<compile_context>
chip_gen: v7x
topology: tpu7x:2x2x1
jax: 0.10.0
libtpu: 0.0.40
codegen_flags: <defaults>
</compile_context>

<pallas_src>
import jax
import jax.numpy as jnp
from jax.experimental import pallas as pl
from jax.experimental.pallas import tpu as pltpu


def _round_up(a: int, b: int) -> int:
    return (a + b - 1) // b * b


def _device_defaults():
    """Per-generation (row tile, scoped VMEM limit).

    128-MiB-VMEM parts (v4/v5e/v5p/v6e) can afford bigger row tiles and a
    higher scoped limit; v7x (64 MiB VMEM) and unknown parts stay conservative.
    """
    kind = jax.devices()[0].device_kind.lower()
    if any(tag in kind for tag in ("v4", "v5", "v6")):
        return 512, 64 * 1024 * 1024
    return 256, 32 * 1024 * 1024


def _graph_conv_kernel(adj_ref, x_ref, inv_ref, out_ref):
    """One GraphConv row tile: out = (A[rows, :] @ x) * inv_deg[rows].

    adj_ref: (TM, Np) int8  adjacency rows, adj[dst, src] in {0, 1}
    x_ref:   (Np, D)  bf16  full activation, VMEM resident (constant index)
    inv_ref: (TM, 1)  f32   1 / clamp(in_degree, 1) for this row tile
    out_ref: (TM, D)  f32   output row tile
    """
    a = adj_ref[...].astype(jnp.bfloat16)        # int8 {0,1} -> exact bf16 (VPU, hides under DMA)
    rst = jnp.dot(a, x_ref[...], preferred_element_type=jnp.float32)
    out_ref[...] = rst * inv_ref[...]


def _graph_conv(adj_i8, x_bf16, inv_deg, tm, vmem_limit_bytes):
    """rst = (A @ x) * inv_deg over full-row adjacency tiles (1-D parallel grid)."""
    n_pad, d = x_bf16.shape
    return pl.pallas_call(
        _graph_conv_kernel,
        out_shape=jax.ShapeDtypeStruct((n_pad, d), jnp.float32),
        grid=(n_pad // tm,),
        in_specs=[
            pl.BlockSpec((tm, n_pad), lambda i: (i, 0)),   # streamed full-row adj tile
            pl.BlockSpec((n_pad, d), lambda i: (0, 0)),    # resident x (never re-fetched)
            pl.BlockSpec((tm, 1), lambda i: (i, 0)),       # inv in-degree row tile
        ],
        out_specs=pl.BlockSpec((tm, d), lambda i: (i, 0)),
        compiler_params=pltpu.CompilerParams(
            dimension_semantics=("parallel",),
            vmem_limit_bytes=vmem_limit_bytes,
        ),
    )(adj_i8, x_bf16, inv_deg)


def lnet_forward(adj, all_emb, *, tm=None, vmem_limit_bytes=None):
    """Pallas LNet.forward.  Returns (x_1, 1) matching the PyTorch module."""
    n, d = all_emb.shape
    assert adj.shape == (n, n)

    tm_default, vmem_default = _device_defaults()
    if tm is None:
        tm = tm_default
    if vmem_limit_bytes is None:
        vmem_limit_bytes = vmem_default

    # Row tile must respect TPU tiling (int8 sublanes / 128-lane alignment of
    # the padded adjacency); clamp for tiny graphs and pad so tiles divide N.
    assert tm % 128 == 0, "tm must be a multiple of 128"
    tm = min(tm, _round_up(n, 128))
    n_pad = _round_up(n, tm)
    pad_n = n_pad - n

    # Single pass over the f32 adjacency: cast to int8 (0/1 exact) + pad.
    adj_i8 = jnp.pad(adj.astype(jnp.int8), ((0, pad_n), (0, pad_n)))

    # in_degrees().float().clamp(min=1) -> 1/deg, computed from the cheap int8
    # copy (0/1 row sums are exact with f32 accumulation).  Padded rows have
    # deg 0 -> inv_deg 1 -> output stays exactly zero.
    deg = jnp.sum(adj_i8, axis=-1, keepdims=True, dtype=jnp.float32)
    inv_deg = 1.0 / jnp.maximum(deg, 1.0)

    # gcn1 -> gcn2 -> gcn3; f32 accumulation of the three layer outputs in the
    # wrapper, single final 1/3 multiply.  x is bf16 between layers (tiny cast).
    x = jnp.pad(all_emb.astype(jnp.bfloat16), ((0, pad_n), (0, 0)))
    acc = jnp.zeros((n_pad, d), jnp.float32)
    for _ in range(3):
        y = _graph_conv(adj_i8, x, inv_deg, tm, vmem_limit_bytes)
        acc = acc + y
        x = y.astype(jnp.bfloat16)
    x_1 = (acc * (1.0 / 3.0))[:n]
    return x_1, 1


def lnet_reference(adj, all_emb):
    """Pure-JAX f32 reference of the same forward (for correctness check)."""
    deg = jnp.sum(adj, axis=-1, keepdims=True)
    inv_deg = 1.0 / jnp.maximum(deg, 1.0)
    x = all_emb
    acc = jnp.zeros_like(x)
    for _ in range(3):
        x = (adj @ x) * inv_deg
        acc = acc + x
    return acc / 3.0


if __name__ == "__main__":
    # Small shapes consistent with the module (module: 6038 users + 3883 items,
    # latent_dim=64).  Here: 380 users + 130 items = 510 nodes, D=64, with a
    # small row tile so the run exercises multiple grid steps and the padding
    # path.
    num_users, num_items, latent_dim = 380, 130, 64
    n = num_users + num_items

    key = jax.random.PRNGKey(0)
    k_user, k_item, k_adj = jax.random.split(key, 3)

    # nn.init.normal_(embedding.weight, std=0.1)
    users_emb = 0.1 * jax.random.normal(k_user, (num_users, latent_dim), jnp.float32)
    items_emb = 0.1 * jax.random.normal(k_item, (num_items, latent_dim), jnp.float32)
    all_emb = jnp.concatenate([users_emb, items_emb], axis=0)   # (N, D)

    # Deterministic synthetic graph: dense 0/1 adjacency, adj[dst, src].
    adj = jax.random.bernoulli(k_adj, p=0.1, shape=(n, n)).astype(jnp.float32)

    x_1, one = lnet_forward(adj, all_emb, tm=128)
    x_1 = jax.block_until_ready(x_1)

    ref = lnet_reference(adj, all_emb)
    assert one == 1
    assert x_1.shape == (n, latent_dim)
    # int8 adjacency values are exact (0/1); tolerance covers the bf16
    # rounding of x between layers and MXU-pass / summation-order differences
    # between the tiled kernel and the XLA matmul.
    assert jnp.allclose(x_1, ref, atol=2e-3, rtol=2e-2), "mismatch vs reference"

    print("KERNEL_OK")
</pallas_src>

<mosaic_0001>
module attributes {stable_mosaic.version = 11 : i64} {
  func.func @_graph_conv_kernel(%arg0: i32, %arg1: memref<128x512xi8, #tpu.memory_space<vmem>>, %arg2: memref<512x64xbf16, #tpu.memory_space<vmem>>, %arg3: memref<128x1xf32, #tpu.memory_space<vmem>>, %arg4: memref<128x64xf32, #tpu.memory_space<vmem>>) attributes {dimension_semantics = [#tpu.dimension_semantics<parallel>], iteration_bounds = array<i64: 4>, scalar_prefetch = 0 : i64, scratch_operands = 0 : i64, tpu.core_type = #tpu.core_type<tc>, window_params = [{transform_indices = @transform_0, window_bounds = array<i64: 128, 512>}, {pipeline_mode = #tpu.pipeline_mode<synchronous>, transform_indices = @transform_1, window_bounds = array<i64: 512, 64>}, {transform_indices = @transform_2, window_bounds = array<i64: 128, 1>}, {transform_indices = @transform_3, window_bounds = array<i64: 128, 64>}]} {
    %c0 = arith.constant 0 : index
    %c0_0 = arith.constant 0 : index
    %0 = vector.load %arg1[%c0, %c0_0] : memref<128x512xi8, #tpu.memory_space<vmem>>, vector<128x512xi8>
    %1 = arith.sitofp %0 : vector<128x512xi8> to vector<128x512xbf16>
    %c0_1 = arith.constant 0 : index
    %c0_2 = arith.constant 0 : index
    %2 = vector.load %arg2[%c0_1, %c0_2] : memref<512x64xbf16, #tpu.memory_space<vmem>>, vector<512x64xbf16>
    %cst = arith.constant dense<0.000000e+00> : vector<128x64xf32>
    %3 = tpu.matmul %1, %2, %cst {dimension_numbers = #tpu.dot_dimension_numbers<[1], [0], [0], [1], [0, 0, 1, 1], [], []>} : vector<128x512xbf16>, vector<512x64xbf16>, vector<128x64xf32> -> vector<128x64xf32>
    %c0_3 = arith.constant 0 : index
    %c0_4 = arith.constant 0 : index
    %4 = vector.load %arg3[%c0_3, %c0_4] : memref<128x1xf32, #tpu.memory_space<vmem>>, vector<128x1xf32>
    %5 = vector.broadcast %4 : vector<128x1xf32> to vector<128x64xf32>
    %6 = arith.mulf %3, %5 : vector<128x64xf32>
    %c0_5 = arith.constant 0 : index
    %c0_6 = arith.constant 0 : index
    %7 = vector.load %arg4[%c0_5, %c0_6] : memref<128x64xf32, #tpu.memory_space<vmem>>, vector<128x64xf32>
    tpu.vector_store %arg4[%c0_5, %c0_6], %6 {strides = array<i32>} : memref<128x64xf32, #tpu.memory_space<vmem>>, vector<128x64xf32>,
    return
  }
  func.func @transform_0(%arg0: i32) -> (i32, i32) {
    %c0_i32 = arith.constant 0 : i32
    %c0_i32_0 = arith.constant 0 : i32
    return %arg0, %c0_i32 : i32, i32
  }
  func.func @transform_1(%arg0: i32) -> (i32, i32) {
    %c0_i32 = arith.constant 0 : i32
    %c0_i32_0 = arith.constant 0 : i32
    %c0_i32_1 = arith.constant 0 : i32
    return %c0_i32, %c0_i32_0 : i32, i32
  }
  func.func @transform_2(%arg0: i32) -> (i32, i32) {
    %c0_i32 = arith.constant 0 : i32
    %c0_i32_0 = arith.constant 0 : i32
    return %arg0, %c0_i32 : i32, i32
  }
  func.func @transform_3(%arg0: i32) -> (i32, i32) {
    %c0_i32 = arith.constant 0 : i32
    %c0_i32_0 = arith.constant 0 : i32
    return %arg0, %c0_i32 : i32, i32
  }
}

</mosaic_0001>

<llo_original>
// kernel: tpu_custom_call.1
$region0: #{tpu_custom_call.1}
  #allocation0 [shape = 'u32[]', space=smem, size = 0x4, offset = 0x4, fixed_abs, tag = 'smem constant byte address 0x4 - core index']
  #allocation1 [shape = 'u32[144,128]{1,0:T(1,128)}', space=vmem, size = 0x12000, scoped, tag = 'internal scratch']
  %s0 = inlined_call_operand.vmem [shape: s8[512,512], index: 0, kind: input, shape index: {}]
  %s1 = inlined_call_operand.vmem [shape: bf16[512,64], index: 1, kind: input, shape index: {}]
  %s2 = inlined_call_operand.vmem [shape: f32[512,1], index: 2, kind: input, shape index: {}]
  %s3 = inlined_call_operand.vmem [shape: f32[512,64], index: 3, kind: output, shape index: {}]
  %s4 = sld [smem:[#allocation0]]
  $region45: #{tpu_custom_call.1} parent=0
    _
  %s6 = ssub.s32 1, %s4
  %s7 = scalar_select 0, %s6, %s4
  loop: start=0, step=1, limit=6
  $region2: #{tpu_custom_call.1} parent=0 // loop_pre_header
    _
  $region3: #{tpu_custom_call.1} parent=0 // loop_header
    %s9 = sphi 0, %s13
    %p10 = scmp.ge.s32.totalorder %s9, 6
    %s19 = sphi 0, %s21
    %s22 = sphi 0, %s19
    %s23 = sphi 0, %s22
    %s39 = sphi 0, %s23
    %s43 = sphi 0, %s43
    %s45 = sphi 0, %s43
    %s46 = sphi 0, %s45
    %s60 = sphi 0, %s46
    %s66 = sphi 0, %s68
    %s69 = sphi 0, %s66
    %s70 = sphi 0, %s69
    %s86 = sphi 0, %s70
    %s92 = sphi 0, %s94
    %s95 = sphi 0, %s92
    %s96 = sphi 0, %s95
    %s112 = sphi 0, %s96
  $region4: #{tpu_custom_call.1} parent=0 // loop_header_branch
    %12 = sbr.rel (%p10) target = $region8
  $region5: #{tpu_custom_call.1} parent=0 // loop_body
    %s14 = ssub.s32 %s9, 1
    %s15 = ssub.s32 %s9, 2
    %s16 = sadd.s32 %s9, 1
    %s17 = ssub.s32 %s9, %s16
    %p18 = scmp.eq.s32.totalorder %s17, 0
    %s20 = sadd.s32 %s19, 1
    %s21 = scalar_select %p18, %s19, %s20
    %p24 = pneg %p18
    %p25 = scmp.eq.s32.totalorder %s9, 3
    %p26 = por %p24, %p25
    %p27 = scmp.ne.s32.totalorder %s19, %s22
    %p28 = scmp.eq.s32.totalorder %s9, 0
    %p29 = por %p27, %p28
    %p30 = scmp.ne.s32.totalorder %s19, %s22
    %p31 = scmp.eq.s32.totalorder %s14, 3
    %p32 = por %p30, %p31
    %p33 = scmp.ne.s32.totalorder %s22, %s23
    %p34 = scmp.eq.s32.totalorder %s14, 0
    %p35 = por %p33, %p34
    %p36 = scmp.ne.s32.totalorder %s22, %s23
    %p37 = scmp.eq.s32.totalorder %s15, 3
    %p38 = por %p36, %p37
    %p40 = scmp.ne.s32.totalorder %s23, %s39
    %p41 = scmp.eq.s32.totalorder %s15, 0
    %p42 = por %p40, %p41
    %s44 = sadd.s32 %s43, 1
    %p47 = scmp.eq.s32.totalorder %s9, 3
    %p48 = scmp.ne.s32.totalorder %s43, %s45
    %p49 = scmp.eq.s32.totalorder %s9, 0
    %p50 = por %p48, %p49
    %p51 = scmp.ne.s32.totalorder %s43, %s45
    %p52 = scmp.eq.s32.totalorder %s14, 3
    %p53 = por %p51, %p52
    %p54 = scmp.ne.s32.totalorder %s45, %s46
    %p55 = scmp.eq.s32.totalorder %s14, 0
    %p56 = por %p54, %p55
    %p57 = scmp.ne.s32.totalorder %s45, %s46
    %p58 = scmp.eq.s32.totalorder %s15, 3
    %p59 = por %p57, %p58
    %p61 = scmp.ne.s32.totalorder %s46, %s60
    %p62 = scmp.eq.s32.totalorder %s15, 0
    %p63 = por %p61, %p62
    %s64 = ssub.s32 %s9, %s16
    %p65 = scmp.eq.s32.totalorder %s64, 0
    %s67 = sadd.s32 %s66, 1
    %s68 = scalar_select %p65, %s66, %s67
    %p71 = pneg %p65
    %p72 = scmp.eq.s32.totalorder %s9, 3
    %p73 = por %p71, %p72
    %p74 = scmp.ne.s32.totalorder %s66, %s69
    %p75 = scmp.eq.s32.totalorder %s9, 0
    %p76 = por %p74, %p75
    %p77 = scmp.ne.s32.totalorder %s66, %s69
    %p78 = scmp.eq.s32.totalorder %s14, 3
    %p79 = por %p77, %p78
    %p80 = scmp.ne.s32.totalorder %s69, %s70
    %p81 = scmp.eq.s32.totalorder %s14, 0
    %p82 = por %p80, %p81
    %p83 = scmp.ne.s32.totalorder %s69, %s70
    %p84 = scmp.eq.s32.totalorder %s15, 3
    %p85 = por %p83, %p84
    %p87 = scmp.ne.s32.totalorder %s70, %s86
    %p88 = scmp.eq.s32.totalorder %s15, 0
    %p89 = por %p87, %p88
    %s90 = ssub.s32 %s9, %s16
    %p91 = scmp.eq.s32.totalorder %s90, 0
    %s93 = sadd.s32 %s92, 1
    %s94 = scalar_select %p91, %s92, %s93
    %p97 = pneg %p91
    %p98 = scmp.eq.s32.totalorder %s9, 3
    %p99 = por %p97, %p98
    %p100 = scmp.ne.s32.totalorder %s92, %s95
    %p101 = scmp.eq.s32.totalorder %s9, 0
    %p102 = por %p100, %p101
    %p103 = scmp.ne.s32.totalorder %s92, %s95
    %p104 = scmp.eq.s32.totalorder %s14, 3
    %p105 = por %p103, %p104
    %p106 = scmp.ne.s32.totalorder %s95, %s96
    %p107 = scmp.eq.s32.totalorder %s14, 0
    %p108 = por %p106, %p107
    %p109 = scmp.ne.s32.totalorder %s95, %s96
    %p110 = scmp.eq.s32.totalorder %s15, 3
    %p111 = por %p109, %p110
    %p113 = scmp.ne.s32.totalorder %s96, %s112
    %p114 = scmp.eq.s32.totalorder %s15, 0
    %p115 = por %p113, %p114
    %p116 = scmp.le.s32.totalorder 1, %s9
    %p117 = scmp.lt.s32.totalorder %s9, 5
    %p118 = pnand %p116, %p117
    %p119 = pneg %p118
    // Predicated region
    $region9: #{tpu_custom_call.1} parent=5 // pred_check
      _
    $region10: #{tpu_custom_call.1} parent=5 // pred_check_branch
      %121 = sbr.rel (%p118) target = $region12
    $region11: #{tpu_custom_call.1} parent=5 // pred_region
      %s122 = ssub.s32 %s9, 1
      // Predicated region
      $region13: #{tpu_custom_call.1} parent=11 // pred_check
        %p123 = pneg %p56
      $region14: #{tpu_custom_call.1} parent=11 // pred_check_branch
        %125 = sbr.rel (%p123) target = $region16
      $region15: #{tpu_custom_call.1} parent=11 // pred_region
        _
      $region16: #{tpu_custom_call.1} parent=11 // pred_fallthru
        _
    $region12: #{tpu_custom_call.1} parent=5 // pred_fallthru
      _
    %p126 = scmp.lt.s32.totalorder %s9, 4
    // Predicated region
    $region17: #{tpu_custom_call.1} parent=5 // pred_check
      %p127 = pneg %p126
    $region18: #{tpu_custom_call.1} parent=5 // pred_check_branch
      %129 = sbr.rel (%p127) target = $region20
    $region19: #{tpu_custom_call.1} parent=5 // pred_region
      // Predicated region
      $region21: #{tpu_custom_call.1} parent=19 // pred_check
        %p130 = pneg %p29
      $region22: #{tpu_custom_call.1} parent=19 // pred_check_branch
        %132 = sbr.rel (%p130) target = $region24
      $region23: #{tpu_custom_call.1} parent=19 // pred_region
        %s133 = smul.u32 4, %s9
        %p134 = scmp.lt.s32.totalorder %s133, 15
        %s135 = scalar_select %p134, %s133, 15
        %s136 = smul.addr %s135, 4
        %s137 = smul.addr %s136, 8
        %s138 = scalar_lea.vmem %s0, %s137
        %s139 = smul.u32 4, %s9
      $region24: #{tpu_custom_call.1} parent=19 // pred_fallthru
        _
      // Predicated region
      $region25: #{tpu_custom_call.1} parent=19 // pred_check
        %p140 = pneg %p76
      $region26: #{tpu_custom_call.1} parent=19 // pred_check_branch
        %142 = sbr.rel (%p140) target = $region28
      $region27: #{tpu_custom_call.1} parent=19 // pred_region
        %s143 = smul.u32 16, %s9
        %p144 = scmp.lt.s32.totalorder %s143, 63
        %s145 = scalar_select %p144, %s143, 63
        %s146 = smul.addr %s145, 8
        %s147 = scalar_lea.vmem %s2, %s146
        %s148 = smul.u32 16, %s9
      $region28: #{tpu_custom_call.1} parent=19 // pred_fallthru
        _
    $region20: #{tpu_custom_call.1} parent=5 // pred_fallthru
      _
    %p149 = scmp.le.s32.totalorder 1, %s9
    %p150 = scmp.lt.s32.totalorder %s9, 5
    %p151 = pnand %p149, %p150
    %p152 = pneg %p151
    // Predicated region
    $region29: #{tpu_custom_call.1} parent=5 // pred_check
      _
    $region30: #{tpu_custom_call.1} parent=5 // pred_check_branch
      %154 = sbr.rel (%p151) target = $region32
    $region31: #{tpu_custom_call.1} parent=5 // pred_region
      %s155 = ssub.s32 %s9, 1
      %s156 = smul.u32 4, %s14
      %p157 = scmp.lt.s32.totalorder %s156, 15
      %s158 = scalar_select %p157, %s156, 15
      %s159 = smul.addr %s158, 4
      %s160 = smul.addr %s159, 8
      %s161 = scalar_lea.vmem %s0, %s160
      %p162 = pneg %p35
      %p163 = pneg %p32
      %p164 = pneg %p56
      %p165 = pneg %p53
      %s166 = smul.u32 16, %s14
      %p167 = scmp.lt.s32.totalorder %s166, 63
      %s168 = scalar_select %p167, %s166, 63
      %s169 = smul.addr %s168, 8
      %s170 = scalar_lea.vmem %s2, %s169
      %p171 = pneg %p82
      %p172 = pneg %p79
      %p173 = pneg %p108
      %p174 = pneg %p105
      %s175 = smul.u32 16, %s14
      %p176 = scmp.lt.s32.totalorder %s175, 63
      %s177 = scalar_select %p176, %s175, 63
      %s178 = smul.addr %s177, 8
      %s179 = scalar_lea.vmem %s3, %s178
      %s180 = smul.u32 4, %s14
      %p181 = scmp.lt.s32.totalorder %s180, 15
      %s182 = scalar_select %p181, %s180, 15
      %s183 = smul.addr %s182, 4
      %s184 = smul.addr %s183, 8
      %s185 = scalar_lea.vmem %s0, %s184
      %s186 = smul.u32 4, %s14
      %s187 = smul.u32 16, %s14
      %p188 = scmp.lt.s32.totalorder %s187, 63
      %s189 = scalar_select %p188, %s187, 63
      %s190 = smul.addr %s189, 8
      %s191 = scalar_lea.vmem %s2, %s190
      %s192 = smul.u32 16, %s14
      %s193 = smul.u32 16, %s14
      %p194 = scmp.lt.s32.totalorder %s193, 63
      %s195 = scalar_select %p194, %s193, 63
      %s196 = smul.addr %s195, 8
      %s197 = scalar_lea.vmem %s3, %s196
      %s198 = smul.u32 16, %s14
      %v200 = vld [vmem:[%s185] sm:$0xff]
      %v201 = vld [vmem:[%s185 + $0x8] sm:$0xff]
      %v202 = vld [vmem:[%s185 + $0x10] sm:$0xff]
      %v203 = vld [vmem:[%s185 + $0x18] sm:$0xff]
      %v204 = vld [vmem:[%s185 + $0x20] sm:$0xff]
      %v205 = vld [vmem:[%s185 + $0x28] sm:$0xff]
      %v206 = vld [vmem:[%s185 + $0x30] sm:$0xff]
      %v207 = vld [vmem:[%s185 + $0x38] sm:$0xff]
      %v208 = vld [vmem:[%s185 + $0x40] sm:$0xff]
      %v209 = vld [vmem:[%s185 + $0x48] sm:$0xff]
      %v210 = vld [vmem:[%s185 + $0x50] sm:$0xff]
      %v211 = vld [vmem:[%s185 + $0x58] sm:$0xff]
      %v212 = vld [vmem:[%s185 + $0x60] sm:$0xff]
      %v213 = vld [vmem:[%s185 + $0x68] sm:$0xff]
      %v214 = vld [vmem:[%s185 + $0x70] sm:$0xff]
      %v215 = vld [vmem:[%s185 + $0x78] sm:$0xff]
      %v216 = vunpack.c.l.s8.bf16 %v200
      %v217 = vunpack.c.l.s8.bf16 %v201
      %v218 = vunpack.c.l.s8.bf16 %v202
      %v219 = vunpack.c.l.s8.bf16 %v203
      %v220 = vunpack.c.h.s8.bf16 %v200
      %v221 = vunpack.c.h.s8.bf16 %v201
      %v222 = vunpack.c.h.s8.bf16 %v202
      %v223 = vunpack.c.h.s8.bf16 %v203
      %v224 = vunpack.c.l.s8.bf16 %v204
      %v225 = vunpack.c.l.s8.bf16 %v205
      %v226 = vunpack.c.l.s8.bf16 %v206
      %v227 = vunpack.c.l.s8.bf16 %v207
      %v228 = vunpack.c.h.s8.bf16 %v204
      %v229 = vunpack.c.h.s8.bf16 %v205
      %v230 = vunpack.c.h.s8.bf16 %v206
      %v231 = vunpack.c.h.s8.bf16 %v207
      %v232 = vunpack.c.l.s8.bf16 %v208
      %v233 = vunpack.c.l.s8.bf16 %v209
      %v234 = vunpack.c.l.s8.bf16 %v210
      %v235 = vunpack.c.l.s8.bf16 %v211
      %v236 = vunpack.c.h.s8.bf16 %v208
      %v237 = vunpack.c.h.s8.bf16 %v209
      %v238 = vunpack.c.h.s8.bf16 %v210
      %v239 = vunpack.c.h.s8.bf16 %v211
      %v240 = vunpack.c.l.s8.bf16 %v212
      %v241 = vunpack.c.l.s8.bf16 %v213
      %v242 = vunpack.c.l.s8.bf16 %v214
      %v243 = vunpack.c.l.s8.bf16 %v215
      %v244 = vunpack.c.h.s8.bf16 %v212
      %v245 = vunpack.c.h.s8.bf16 %v213
      %v246 = vunpack.c.h.s8.bf16 %v214
      %v247 = vunpack.c.h.s8.bf16 %v215
      %v248 = vld [vmem:[%s1] sm:$0xf]
      %v249 = vld [vmem:[%s1 + $0x4] sm:$0xf]
      %v250 = vld [vmem:[%s1 + $0x8] sm:$0xf]
      %v251 = vld [vmem:[%s1 + $0xc] sm:$0xf]
      %v252 = vld [vmem:[%s1 + $0x10] sm:$0xf]
      %v253 = vld [vmem:[%s1 + $0x14] sm:$0xf]
      %v254 = vld [vmem:[%s1 + $0x18] sm:$0xf]
      %v255 = vld [vmem:[%s1 + $0x1c] sm:$0xf]
      %v256 = vld [vmem:[%s1 + $0x20] sm:$0xf]
      %v257 = vld [vmem:[%s1 + $0x24] sm:$0xf]
      %v258 = vld [vmem:[%s1 + $0x28] sm:$0xf]
      %v259 = vld [vmem:[%s1 + $0x2c] sm:$0xf]
      %v260 = vld [vmem:[%s1 + $0x30] sm:$0xf]
      %v261 = vld [vmem:[%s1 + $0x34] sm:$0xf]
      %v262 = vld [vmem:[%s1 + $0x38] sm:$0xf]
      %v263 = vld [vmem:[%s1 + $0x3c] sm:$0xf]
      %v264 = vld [vmem:[%s1 + $0x40] sm:$0xf]
      %v265 = vld [vmem:[%s1 + $0x44] sm:$0xf]
      %v266 = vld [vmem:[%s1 + $0x48] sm:$0xf]
      %v267 = vld [vmem:[%s1 + $0x4c] sm:$0xf]
      %v268 = vld [vmem:[%s1 + $0x50] sm:$0xf]
      %v269 = vld [vmem:[%s1 + $0x54] sm:$0xf]
      %v270 = vld [vmem:[%s1 + $0x58] sm:$0xf]
      %v271 = vld [vmem:[%s1 + $0x5c] sm:$0xf]
      %v272 = vld [vmem:[%s1 + $0x60] sm:$0xf]
      %v273 = vld [vmem:[%s1 + $0x64] sm:$0xf]
      %v274 = vld [vmem:[%s1 + $0x68] sm:$0xf]
      %v275 = vld [vmem:[%s1 + $0x6c] sm:$0xf]
      %v276 = vld [vmem:[%s1 + $0x70] sm:$0xf]
      %v277 = vld [vmem:[%s1 + $0x74] sm:$0xf]
      %v278 = vld [vmem:[%s1 + $0x78] sm:$0xf]
      %v279 = vld [vmem:[%s1 + $0x7c] sm:$0xf]
      %v280 = vld [vmem:[%s1 + $0x80] sm:$0xf]
      %v281 = vld [vmem:[%s1 + $0x84] sm:$0xf]
      %v282 = vld [vmem:[%s1 + $0x88] sm:$0xf]
      %v283 = vld [vmem:[%s1 + $0x8c] sm:$0xf]
      %v284 = vld [vmem:[%s1 + $0x90] sm:$0xf]
      %v285 = vld [vmem:[%s1 + $0x94] sm:$0xf]
      %v286 = vld [vmem:[%s1 + $0x98] sm:$0xf]
      %v287 = vld [vmem:[%s1 + $0x9c] sm:$0xf]
      %v288 = vld [vmem:[%s1 + $0xa0] sm:$0xf]
      %v289 = vld [vmem:[%s1 + $0xa4] sm:$0xf]
      %v290 = vld [vmem:[%s1 + $0xa8] sm:$0xf]
      %v291 = vld [vmem:[%s1 + $0xac] sm:$0xf]
      %v292 = vld [vmem:[%s1 + $0xb0] sm:$0xf]
      %v293 = vld [vmem:[%s1 + $0xb4] sm:$0xf]
      %v294 = vld [vmem:[%s1 + $0xb8] sm:$0xf]
      %v295 = vld [vmem:[%s1 + $0xbc] sm:$0xf]
      %v296 = vld [vmem:[%s1 + $0xc0] sm:$0xf]
      %v297 = vld [vmem:[%s1 + $0xc4] sm:$0xf]
      %v298 = vld [vmem:[%s1 + $0xc8] sm:$0xf]
      %v299 = vld [vmem:[%s1 + $0xcc] sm:$0xf]
      %v300 = vld [vmem:[%s1 + $0xd0] sm:$0xf]
      %v301 = vld [vmem:[%s1 + $0xd4] sm:$0xf]
      %v302 = vld [vmem:[%s1 + $0xd8] sm:$0xf]
      %v303 = vld [vmem:[%s1 + $0xdc] sm:$0xf]
      %v304 = vld [vmem:[%s1 + $0xe0] sm:$0xf]
      %v305 = vld [vmem:[%s1 + $0xe4] sm:$0xf]
      %v306 = vld [vmem:[%s1 + $0xe8] sm:$0xf]
      %v307 = vld [vmem:[%s1 + $0xec] sm:$0xf]
      %v308 = vld [vmem:[%s1 + $0xf0] sm:$0xf]
      %v309 = vld [vmem:[%s1 + $0xf4] sm:$0xf]
      %v310 = vld [vmem:[%s1 + $0xf8] sm:$0xf]
      %v311 = vld [vmem:[%s1 + $0xfc] sm:$0xf]
      %v376 = vunpack.c.l.b16 %v248
      %v377 = vunpack.c.l.b16 %v249
      %v378 = vunpack.c.l.b16 %v250
      %v379 = vunpack.c.l.b16 %v251
      %v380 = vunpack.c.l.b16 %v252
      %v381 = vunpack.c.l.b16 %v253
      %v382 = vunpack.c.l.b16 %v254
      %v383 = vunpack.c.l.b16 %v255
      %v384 = vunpack.c.l.b16 %v256
      %v385 = vunpack.c.l.b16 %v257
      %v386 = vunpack.c.l.b16 %v258
      %v387 = vunpack.c.l.b16 %v259
      %v388 = vunpack.c.l.b16 %v260
      %v389 = vunpack.c.l.b16 %v261
      %v390 = vunpack.c.l.b16 %v262
      %v391 = vunpack.c.l.b16 %v263
      %v392 = vunpack.c.l.b16 %v264
      %v393 = vunpack.c.l.b16 %v265
      %v394 = vunpack.c.l.b16 %v266
      %v395 = vunpack.c.l.b16 %v267
      %v396 = vunpack.c.l.b16 %v268
      %v397 = vunpack.c.l.b16 %v269
      %v398 = vunpack.c.l.b16 %v270
      %v399 = vunpack.c.l.b16 %v271
      %v400 = vunpack.c.l.b16 %v272
      %v401 = vunpack.c.l.b16 %v273
      %v402 = vunpack.c.l.b16 %v274
      %v403 = vunpack.c.l.b16 %v275
      %v404 = vunpack.c.l.b16 %v276
      %v405 = vunpack.c.l.b16 %v277
      %v406 = vunpack.c.l.b16 %v278
      %v407 = vunpack.c.l.b16 %v279
      %v408 = vunpack.c.l.b16 %v280
      %v409 = vunpack.c.l.b16 %v281
      %v410 = vunpack.c.l.b16 %v282
      %v411 = vunpack.c.l.b16 %v283
      %v412 = vunpack.c.l.b16 %v284
      %v413 = vunpack.c.l.b16 %v285
      %v414 = vunpack.c.l.b16 %v286
      %v415 = vunpack.c.l.b16 %v287
      %v416 = vunpack.c.l.b16 %v288
      %v417 = vunpack.c.l.b16 %v289
      %v418 = vunpack.c.l.b16 %v290
      %v419 = vunpack.c.l.b16 %v291
      %v420 = vunpack.c.l.b16 %v292
      %v421 = vunpack.c.l.b16 %v293
      %v422 = vunpack.c.l.b16 %v294
      %v423 = vunpack.c.l.b16 %v295
      %v424 = vunpack.c.l.b16 %v296
      %v425 = vunpack.c.l.b16 %v297
      %v426 = vunpack.c.l.b16 %v298
      %v427 = vunpack.c.l.b16 %v299
      %v428 = vunpack.c.l.b16 %v300
      %v429 = vunpack.c.l.b16 %v301
      %v430 = vunpack.c.l.b16 %v302
      %v431 = vunpack.c.l.b16 %v303
      %v432 = vunpack.c.l.b16 %v304
      %v433 = vunpack.c.l.b16 %v305
      %v434 = vunpack.c.l.b16 %v306
      %v435 = vunpack.c.l.b16 %v307
      %v436 = vunpack.c.l.b16 %v308
      %v437 = vunpack.c.l.b16 %v309
      %v438 = vunpack.c.l.b16 %v310
      %v439 = vunpack.c.l.b16 %v311
      %v440 = vpack.c.b16 %v377, %v376
      %v441 = vpack.c.b16 %v379, %v378
      %v442 = vpack.c.b16 %v381, %v380
      %v443 = vpack.c.b16 %v383, %v382
      %v444 = vpack.c.b16 %v385, %v384
      %v445 = vpack.c.b16 %v387, %v386
      %v446 = vpack.c.b16 %v389, %v388
      %v447 = vpack.c.b16 %v391, %v390
      %v448 = vpack.c.b16 %v393, %v392
      %v449 = vpack.c.b16 %v395, %v394
      %v450 = vpack.c.b16 %v397, %v396
      %v451 = vpack.c.b16 %v399, %v398
      %v452 = vpack.c.b16 %v401, %v400
      %v453 = vpack.c.b16 %v403, %v402
      %v454 = vpack.c.b16 %v405, %v404
      %v455 = vpack.c.b16 %v407, %v406
      %v456 = vpack.c.b16 %v409, %v408
      %v457 = vpack.c.b16 %v411, %v410
      %v458 = vpack.c.b16 %v413, %v412
      %v459 = vpack.c.b16 %v415, %v414
      %v460 = vpack.c.b16 %v417, %v416
      %v461 = vpack.c.b16 %v419, %v418
      %v462 = vpack.c.b16 %v421, %v420
      %v463 = vpack.c.b16 %v423, %v422
      %v464 = vpack.c.b16 %v425, %v424
      %v465 = vpack.c.b16 %v427, %v426
      %v466 = vpack.c.b16 %v429, %v428
      %v467 = vpack.c.b16 %v431, %v430
      %v468 = vpack.c.b16 %v433, %v432
      %v469 = vpack.c.b16 %v435, %v434
      %v470 = vpack.c.b16 %v437, %v436
      %v471 = vpack.c.b16 %v439, %v438
      %504 = vmatprep.subr.bf16.mxu0 0
      %505 = vmatpush1.bf16.msra.mxu0 %v440
      %506 = vmatprep.subr.bf16.mxu0 0
      %507 = vmatpush1.bf16.msra.mxu0 %v441
      %508 = vmatprep.subr.bf16.mxu0 0
      %509 = vmatpush1.bf16.msra.mxu0 %v442
      %510 = vmatprep.subr.bf16.mxu0 0
      %511 = vmatpush1.bf16.msra.mxu0 %v443
      %512 = vmatprep.subr.bf16.mxu0 0
      %513 = vmatpush1.bf16.msra.mxu0 %v444
      %514 = vmatprep.subr.bf16.mxu0 0
      %515 = vmatpush1.bf16.msra.mxu0 %v445
      %516 = vmatprep.subr.bf16.mxu0 0
      %517 = vmatpush1.bf16.msra.mxu0 %v446
      %518 = vmatprep.subr.bf16.mxu0 0
      %519 = vmatpush1.bf16.msra.mxu0 %v447
      %520 = vmatprep.subr.bf16.mxu0 0
      %521 = vmatpush1.bf16.msra.mxu0 %v448
      %522 = vmatprep.subr.bf16.mxu0 0
      %523 = vmatpush1.bf16.msra.mxu0 %v449
      %524 = vmatprep.subr.bf16.mxu0 0
      %525 = vmatpush1.bf16.msra.mxu0 %v450
      %526 = vmatprep.subr.bf16.mxu0 0
      %527 = vmatpush1.bf16.msra.mxu0 %v451
      %528 = vmatprep.subr.bf16.mxu0 0
      %529 = vmatpush1.bf16.msra.mxu0 %v452
      %530 = vmatprep.subr.bf16.mxu0 0
      %531 = vmatpush1.bf16.msra.mxu0 %v453
      %532 = vmatprep.subr.bf16.mxu0 0
      %533 = vmatpush1.bf16.msra.mxu0 %v454
      %534 = vmatprep.subr.bf16.mxu0 0
      %535 = vmatpush1.bf16.msra.mxu0 %v455
      %536 = vmatprep.mubr.bf16.mxu0 %v217
      %537 = vmatmul.mubr.bf16.gmra.mrb[0].mxu0 %v216
      %v538 = vpop.f32.mrb[0].mxu0
      %v539 = vadd.f32 0.0, %v538
      %v540 = vpop.f32.mrb[0].mxu0
      %v541 = vpop.f32.mrb[0].mxu0
      %v542 = vadd.f32 0.0, %v541
      %v543 = vpop.f32.mrb[0].mxu0
      %544 = vmatprep.mubr.bf16.mxu0 %v221
      %545 = vmatmul.mubr.bf16.gmra.mrb[0].mxu0 %v220
      %v546 = vpop.f32.mrb[0].mxu0
      %v547 = vadd.f32 0.0, %v546
      %v548 = vpop.f32.mrb[0].mxu0
      %v549 = vpop.f32.mrb[0].mxu0
      %v550 = vadd.f32 0.0, %v549
      %v551 = vpop.f32.mrb[0].mxu0
      %552 = vmatprep.mubr.bf16.mxu0 %v225
      %553 = vmatmul.mubr.bf16.gmra.mrb[0].mxu0 %v224
      %v554 = vpop.f32.mrb[0].mxu0
      %v555 = vadd.f32 0.0, %v554
      %v556 = vpop.f32.mrb[0].mxu0
      %v557 = vpop.f32.mrb[0].mxu0
      %v558 = vadd.f32 0.0, %v557
      %v559 = vpop.f32.mrb[0].mxu0
      %560 = vmatprep.mubr.bf16.mxu0 %v229
      %561 = vmatmul.mubr.bf16.gmra.mrb[0].mxu0 %v228
      %v562 = vpop.f32.mrb[0].mxu0
      %v563 = vadd.f32 0.0, %v562
      %v564 = vpop.f32.mrb[0].mxu0
      %v565 = vpop.f32.mrb[0].mxu0
      %v566 = vadd.f32 0.0, %v565
      %v567 = vpop.f32.mrb[0].mxu0
      %568 = vmatprep.mubr.bf16.mxu0 %v233
      %569 = vmatmul.mubr.bf16.gmra.mrb[0].mxu0 %v232
      %v570 = vpop.f32.mrb[0].mxu0
      %v571 = vadd.f32 0.0, %v570
      %v572 = vpop.f32.mrb[0].mxu0
      %v573 = vpop.f32.mrb[0].mxu0
      %v574 = vadd.f32 0.0, %v573
      %v575 = vpop.f32.mrb[0].mxu0
      %576 = vmatprep.mubr.bf16.mxu0 %v237
      %577 = vmatmul.mubr.bf16.gmra.mrb[0].mxu0 %v236
      %v578 = vpop.f32.mrb[0].mxu0
      %v579 = vadd.f32 0.0, %v578
      %v580 = vpop.f32.mrb[0].mxu0
      %v581 = vpop.f32.mrb[0].mxu0
      %v582 = vadd.f32 0.0, %v581
      %v583 = vpop.f32.mrb[0].mxu0
      %584 = vmatprep.mubr.bf16.mxu0 %v241
      %585 = vmatmul.mubr.bf16.gmra.mrb[0].mxu0 %v240
      %v586 = vpop.f32.mrb[0].mxu0
      %v587 = vadd.f32 0.0, %v586
      %v588 = vpop.f32.mrb[0].mxu0
      %v589 = vpop.f32.mrb[0].mxu0
      %v590 = vadd.f32 0.0, %v589
      %v591 = vpop.f32.mrb[0].mxu0
      %592 = vmatprep.mubr.bf16.mxu0 %v245
      %593 = vmatmul.mubr.bf16.gmra.mrb[0].mxu0 %v244
      %v594 = vpop.f32.mrb[0].mxu0
      %v595 = vadd.f32 0.0, %v594
      %v596 = vpop.f32.mrb[0].mxu0
      %v597 = vpop.f32.mrb[0].mxu0
      %v598 = vadd.f32 0.0, %v597
      %v599 = vpop.f32.mrb[0].mxu0
      %600 = vdwg.mxu0
      %601 = vmatprep.subr.bf16.mxu0 0
      %602 = vmatpush1.bf16.msra.mxu0 %v456
      %603 = vmatprep.subr.bf16.mxu0 0
      %604 = vmatpush1.bf16.msra.mxu0 %v457
      %605 = vmatprep.subr.bf16.mxu0 0
      %606 = vmatpush1.bf16.msra.mxu0 %v458
      %607 = vmatprep.subr.bf16.mxu0 0
      %608 = vmatpush1.bf16.msra.mxu0 %v459
      %609 = vmatprep.subr.bf16.mxu0 0
      %610 = vmatpush1.bf16.msra.mxu0 %v460
      %611 = vmatprep.subr.bf16.mxu0 0
      %612 = vmatpush1.bf16.msra.mxu0 %v461
      %613 = vmatprep.subr.bf16.mxu0 0
      %614 = vmatpush1.bf16.msra.mxu0 %v462
      %615 = vmatprep.subr.bf16.mxu0 0
      %616 = vmatpush1.bf16.msra.mxu0 %v463
      %617 = vmatprep.subr.bf16.mxu0 0
      %618 = vmatpush1.bf16.msra.mxu0 %v464
      %619 = vmatprep.subr.bf16.mxu0 0
      %620 = vmatpush1.bf16.msra.mxu0 %v465
      %621 = vmatprep.subr.bf16.mxu0 0
      %622 = vmatpush1.bf16.msra.mxu0 %v466
      %623 = vmatprep.subr.bf16.mxu0 0
      %624 = vmatpush1.bf16.msra.mxu0 %v467
      %625 = vmatprep.subr.bf16.mxu0 0
      %626 = vmatpush1.bf16.msra.mxu0 %v468
      %627 = vmatprep.subr.bf16.mxu0 0
      %628 = vmatpush1.bf16.msra.mxu0 %v469
      %629 = vmatprep.subr.bf16.mxu0 0
      %630 = vmatpush1.bf16.msra.mxu0 %v470
      %631 = vmatprep.subr.bf16.mxu0 0
      %632 = vmatpush1.bf16.msra.mxu0 %v471
      %633 = vmatprep.mubr.bf16.mxu0 %v219
      %634 = vmatmul.mubr.bf16.gmra.mrb[0].mxu0 %v218
      %v635 = vpop.f32.mrb[0].mxu0
      %v636 = vadd.f32 %v539, %v635
      %v637 = vpop.f32.mrb[0].mxu0
      %v638 = vpop.f32.mrb[0].mxu0
      %v639 = vadd.f32 %v542, %v638
      %v640 = vpop.f32.mrb[0].mxu0
      %641 = vmatprep.mubr.bf16.mxu0 %v223
      %642 = vmatmul.mubr.bf16.gmra.mrb[0].mxu0 %v222
      %v643 = vpop.f32.mrb[0].mxu0
      %v644 = vadd.f32 %v547, %v643
      %v645 = vpop.f32.mrb[0].mxu0
      %v646 = vpop.f32.mrb[0].mxu0
      %v647 = vadd.f32 %v550, %v646
      %v648 = vpop.f32.mrb[0].mxu0
      %649 = vmatprep.mubr.bf16.mxu0 %v227
      %650 = vmatmul.mubr.bf16.gmra.mrb[0].mxu0 %v226
      %v651 = vpop.f32.mrb[0].mxu0
      %v652 = vadd.f32 %v555, %v651
      %v653 = vpop.f32.mrb[0].mxu0
      %v654 = vpop.f32.mrb[0].mxu0
      %v655 = vadd.f32 %v558, %v654
      %v656 = vpop.f32.mrb[0].mxu0
      %657 = vmatprep.mubr.bf16.mxu0 %v231
      %658 = vmatmul.mubr.bf16.gmra.mrb[0].mxu0 %v230
      %v659 = vpop.f32.mrb[0].mxu0
      %v660 = vadd.f32 %v563, %v659
      %v661 = vpop.f32.mrb[0].mxu0
      %v662 = vpop.f32.mrb[0].mxu0
      %v663 = vadd.f32 %v566, %v662
      %v664 = vpop.f32.mrb[0].mxu0
      %665 = vmatprep.mubr.bf16.mxu0 %v235
      %666 = vmatmul.mubr.bf16.gmra.mrb[0].mxu0 %v234
      %v667 = vpop.f32.mrb[0].mxu0
      %v668 = vadd.f32 %v571, %v667
      %v669 = vpop.f32.mrb[0].mxu0
      %v670 = vpop.f32.mrb[0].mxu0
      %v671 = vadd.f32 %v574, %v670
      %v672 = vpop.f32.mrb[0].mxu0
      %673 = vmatprep.mubr.bf16.mxu0 %v239
      %674 = vmatmul.mubr.bf16.gmra.mrb[0].mxu0 %v238
      %v675 = vpop.f32.mrb[0].mxu0
      %v676 = vadd.f32 %v579, %v675
      %v677 = vpop.f32.mrb[0].mxu0
      %v678 = vpop.f32.mrb[0].mxu0
      %v679 = vadd.f32 %v582, %v678
      %v680 = vpop.f32.mrb[0].mxu0
      %681 = vmatprep.mubr.bf16.mxu0 %v243
      %682 = vmatmul.mubr.bf16.gmra.mrb[0].mxu0 %v242
      %v683 = vpop.f32.mrb[0].mxu0
      %v684 = vadd.f32 %v587, %v683
      %v685 = vpop.f32.mrb[0].mxu0
      %v686 = vpop.f32.mrb[0].mxu0
      %v687 = vadd.f32 %v590, %v686
      %v688 = vpop.f32.mrb[0].mxu0
      %689 = vmatprep.mubr.bf16.mxu0 %v247
      %690 = vmatmul.mubr.bf16.gmra.mrb[0].mxu0 %v246
      %v691 = vpop.f32.mrb[0].mxu0
      %v692 = vadd.f32 %v595, %v691
      %v693 = vpop.f32.mrb[0].mxu0
      %v694 = vpop.f32.mrb[0].mxu0
      %v695 = vadd.f32 %v598, %v694
      %v696 = vpop.f32.mrb[0].mxu0
      %697 = vdwg.mxu0
      %v698 = vld [vmem:[%s191] sm:$0xff]
      %v699 = vld [vmem:[%s191 + $0x8] sm:$0xff]
      %v700 = vld [vmem:[%s191 + $0x10] sm:$0xff]
      %v701 = vld [vmem:[%s191 + $0x18] sm:$0xff]
      %v702 = vld [vmem:[%s191 + $0x20] sm:$0xff]
      %v703 = vld [vmem:[%s191 + $0x28] sm:$0xff]
      %v704 = vld [vmem:[%s191 + $0x30] sm:$0xff]
      %v705 = vld [vmem:[%s191 + $0x38] sm:$0xff]
      %v706 = vld [vmem:[%s191 + $0x40] sm:$0xff]
      %v707 = vld [vmem:[%s191 + $0x48] sm:$0xff]
      %v708 = vld [vmem:[%s191 + $0x50] sm:$0xff]
      %v709 = vld [vmem:[%s191 + $0x58] sm:$0xff]
      %v710 = vld [vmem:[%s191 + $0x60] sm:$0xff]
      %v711 = vld [vmem:[%s191 + $0x68] sm:$0xff]
      %v712 = vld [vmem:[%s191 + $0x70] sm:$0xff]
      %v713 = vld [vmem:[%s191 + $0x78] sm:$0xff]
      %715 = vset.pattern.permute.xlu0 0
      %716 = vperm.xlu0 %715, %v698
      %v717 = vpop.permute.xlu0 %716
      %720 = vset.pattern.permute.xlu0 0
      %721 = vperm.xlu0 %720, %v699
      %v722 = vpop.permute.xlu0 %721
      %725 = vset.pattern.permute.xlu0 0
      %726 = vperm.xlu0 %725, %v700
      %v727 = vpop.permute.xlu0 %726
      %730 = vset.pattern.permute.xlu0 0
      %731 = vperm.xlu0 %730, %v701
      %v732 = vpop.permute.xlu0 %731
      %735 = vset.pattern.permute.xlu0 0
      %736 = vperm.xlu0 %735, %v702
      %v737 = vpop.permute.xlu0 %736
      %740 = vset.pattern.permute.xlu0 0
      %741 = vperm.xlu0 %740, %v703
      %v742 = vpop.permute.xlu0 %741
      %745 = vset.pattern.permute.xlu0 0
      %746 = vperm.xlu0 %745, %v704
      %v747 = vpop.permute.xlu0 %746
      %750 = vset.pattern.permute.xlu0 0
      %751 = vperm.xlu0 %750, %v705
      %v752 = vpop.permute.xlu0 %751
      %755 = vset.pattern.permute.xlu0 0
      %756 = vperm.xlu0 %755, %v706
      %v757 = vpop.permute.xlu0 %756
      %760 = vset.pattern.permute.xlu0 0
      %761 = vperm.xlu0 %760, %v707
      %v762 = vpop.permute.xlu0 %761
      %765 = vset.pattern.permute.xlu0 0
      %766 = vperm.xlu0 %765, %v708
      %v767 = vpop.permute.xlu0 %766
      %770 = vset.pattern.permute.xlu0 0
      %771 = vperm.xlu0 %770, %v709
      %v772 = vpop.permute.xlu0 %771
      %775 = vset.pattern.permute.xlu0 0
      %776 = vperm.xlu0 %775, %v710
      %v777 = vpop.permute.xlu0 %776
      %780 = vset.pattern.permute.xlu0 0
      %781 = vperm.xlu0 %780, %v711
      %v782 = vpop.permute.xlu0 %781
      %785 = vset.pattern.permute.xlu0 0
      %786 = vperm.xlu0 %785, %v712
      %v787 = vpop.permute.xlu0 %786
      %790 = vset.pattern.permute.xlu0 0
      %791 = vperm.xlu0 %790, %v713
      %v792 = vpop.permute.xlu0 %791
      %v794 = vmul.f32 %v636, %v717
      %v795 = vmul.f32 %v639, %v722
      %v796 = vmul.f32 %v644, %v727
      %v797 = vmul.f32 %v647, %v732
      %v798 = vmul.f32 %v652, %v737
      %v799 = vmul.f32 %v655, %v742
      %v800 = vmul.f32 %v660, %v747
      %v801 = vmul.f32 %v663, %v752
      %v802 = vmul.f32 %v668, %v757
      %v803 = vmul.f32 %v671, %v762
      %v804 = vmul.f32 %v676, %v767
      %v805 = vmul.f32 %v679, %v772
      %v806 = vmul.f32 %v684, %v777
      %v807 = vmul.f32 %v687, %v782
      %v808 = vmul.f32 %v692, %v787
      %v809 = vmul.f32 %v695, %v792
      %vm810 = vcmask 523264
      %811 = vst.msk [vmem:[%s197] sm:$0xff] %vm810, %v794
      %812 = vst.msk [vmem:[%s197 + $0x8] sm:$0xff] %vm810, %v795
      %813 = vst.msk [vmem:[%s197 + $0x10] sm:$0xff] %vm810, %v796
      %814 = vst.msk [vmem:[%s197 + $0x18] sm:$0xff] %vm810, %v797
      %815 = vst.msk [vmem:[%s197 + $0x20] sm:$0xff] %vm810, %v798
      %816 = vst.msk [vmem:[%s197 + $0x28] sm:$0xff] %vm810, %v799
      %817 = vst.msk [vmem:[%s197 + $0x30] sm:$0xff] %vm810, %v800
      %818 = vst.msk [vmem:[%s197 + $0x38] sm:$0xff] %vm810, %v801
      %819 = vst.msk [vmem:[%s197 + $0x40] sm:$0xff] %vm810, %v802
      %820 = vst.msk [vmem:[%s197 + $0x48] sm:$0xff] %vm810, %v803
      %821 = vst.msk [vmem:[%s197 + $0x50] sm:$0xff] %vm810, %v804
      %822 = vst.msk [vmem:[%s197 + $0x58] sm:$0xff] %vm810, %v805
      %823 = vst.msk [vmem:[%s197 + $0x60] sm:$0xff] %vm810, %v806
      %824 = vst.msk [vmem:[%s197 + $0x68] sm:$0xff] %vm810, %v807
      %825 = vst.msk [vmem:[%s197 + $0x70] sm:$0xff] %vm810, %v808
      %826 = vst.msk [vmem:[%s197 + $0x78] sm:$0xff] %vm810, %v809
      %s827 = smul.u32 16, %s14
      %p828 = scmp.lt.s32.totalorder %s827, 63
      %s829 = scalar_select %p828, %s827, 63
      %s830 = smul.addr %s829, 8
      %s831 = scalar_lea.vmem %s3, %s830
      // Predicated region
      $region33: #{tpu_custom_call.1} parent=31 // pred_check
        %p832 = pneg %p105
      $region34: #{tpu_custom_call.1} parent=31 // pred_check_branch
        %834 = sbr.rel (%p832) target = $region36
      $region35: #{tpu_custom_call.1} parent=31 // pred_region
        %s835 = smul.u32 16, %s14
      $region36: #{tpu_custom_call.1} parent=31 // pred_fallthru
        _
    $region32: #{tpu_custom_call.1} parent=5 // pred_fallthru
      _
    %p836 = scmp.le.s32.totalorder 2, %s9
    // Predicated region
    $region37: #{tpu_custom_call.1} parent=5 // pred_check
      %p837 = pneg %p836
    $region38: #{tpu_custom_call.1} parent=5 // pred_check_branch
      %839 = sbr.rel (%p837) target = $region40
    $region39: #{tpu_custom_call.1} parent=5 // pred_region
      %s840 = ssub.s32 %s9, 2
      // Predicated region
      $region41: #{tpu_custom_call.1} parent=39 // pred_check
        %p841 = pneg %p111
      $region42: #{tpu_custom_call.1} parent=39 // pred_check_branch
        %843 = sbr.rel (%p841) target = $region44
      $region43: #{tpu_custom_call.1} parent=39 // pred_region
        %s844 = smul.u32 16, %s15
        %p845 = scmp.lt.s32.totalorder %s844, 63
        %s846 = scalar_select %p845, %s844, 63
        %s847 = smul.addr %s846, 8
        %s848 = scalar_lea.vmem %s3, %s847
      $region44: #{tpu_custom_call.1} parent=39 // pred_fallthru
        _
    $region40: #{tpu_custom_call.1} parent=5 // pred_fallthru
      _
  $region6: #{tpu_custom_call.1} parent=0 // loop_footer
    %s13 = sadd.s32 1, %s9
  $region7: #{tpu_custom_call.1} parent=0 // loop_footer_branch
    %8 = sbr.rel target = $region3
  $region8: #{tpu_custom_call.1} parent=0 // loop_exit
    _

</llo_original>
